<compile_context>
chip_gen: v7x
topology: tpu7x:2x2x1
jax: 0.10.0
libtpu: 0.0.40
codegen_flags: <defaults>
</compile_context>

<pallas_src>
import math

import jax
import jax.numpy as jnp
from jax.experimental import pallas as pl
from jax.experimental.pallas import tpu as pltpu


def _to_rgb_kernel(wmod_ref, b_ref, x_ref, o_ref):
    """One grid step == one (batch, HW-tile) pair, channels-first layout.

    wmod_ref : (1, C_out, C_in)  pre-modulated weight (weight * styles * dcoefs) for this batch
    b_ref    : (C_out, 1)        ToRGB bias as a column (broadcast along the lane axis)
    x_ref    : (1, C_in, T)      pixel tile, channels-first
    o_ref    : (1, C_out, T)     output tile, channels-first, lane-dense (T multiple of 128)
    """
    y = jnp.dot(wmod_ref[0], x_ref[0], preferred_element_type=jnp.float32)  # (C_out, T)
    o_ref[0] = (y + b_ref[...]).astype(o_ref.dtype)


def _pick_hw_tile(hw, max_tile=2048):
    """Largest lane-dense (multiple-of-128) tile <= max_tile that evenly divides HW."""
    if hw <= max_tile:
        return hw
    t = max_tile - (max_tile % 128)
    while t >= 128:
        if hw % t == 0:
            return t
        t -= 128
    # TODO(synk): ragged HW (no multiple-of-128 divisor) — fall back to a single block.
    return hw


def to_rgb_layer(x_nchw, w_latent, affine_weight, affine_bias, weight, bias):
    """ToRGBLayer.forward(x, w) with fused_modconv semantics of modulated_style_mlp."""
    B, C_in, H, W = x_nchw.shape
    C_out = weight.shape[0]
    w_dim = w_latent.shape[1]
    HW = H * W
    cdt = x_nchw.dtype  # compute/output dtype follows x (PyTorch casts params to x.dtype)

    # --- tiny O(B*C_in*C_out) parameter math, done once in f32 in the wrapper ---------
    weight_gain = 1.0 / math.sqrt(w_dim)
    styles = (
        jnp.dot(w_latent.astype(jnp.float32),
                (affine_weight.astype(jnp.float32) * weight_gain).T)
        + affine_bias.astype(jnp.float32)
    )                                                                  # (B, C_in)
    w_f32 = weight.astype(jnp.float32)
    w_mod = w_f32[None, :, :] * styles[:, None, :]                     # (B, C_out, C_in)
    dcoefs = jax.lax.rsqrt(jnp.sum(w_mod * w_mod, axis=2, keepdims=True) + 1e-8)
    w_mod = (w_mod * dcoefs).astype(cdt)                               # fold styles + dcoefs

    # --- layout: pure reshape, NO transpose --------------------------------------------
    x_flat = x_nchw.reshape(B, C_in, HW)                               # (B, C_in, HW)
    b_col = bias.reshape(C_out, 1).astype(jnp.float32)                 # (C_out, 1)

    tile = _pick_hw_tile(HW)
    grid = (B, HW // tile)

    # --- explicit VMEM budget (double-buffered x/out tiles + resident weight/bias) ------
    itemsize = jnp.dtype(cdt).itemsize
    need = (2 * (C_in * tile + C_out * tile) * itemsize
            + 2 * C_out * C_in * itemsize
            + (1 << 20))
    vmem_limit = int(min(max(2 * need, 8 << 20), 56 << 20))            # stay under v7x 64 MiB

    out_flat = pl.pallas_call(
        _to_rgb_kernel,
        out_shape=jax.ShapeDtypeStruct((B, C_out, HW), cdt),
        grid_spec=pltpu.PrefetchScalarGridSpec(
            num_scalar_prefetch=0,
            grid=grid,
            in_specs=[
                pl.BlockSpec((1, C_out, C_in), lambda b, t: (b, 0, 0)),   # w_mod (per batch)
                pl.BlockSpec((C_out, 1), lambda b, t: (0, 0)),            # bias (resident)
                pl.BlockSpec((1, C_in, tile), lambda b, t: (b, 0, t)),    # x tile
            ],
            out_specs=pl.BlockSpec((1, C_out, tile), lambda b, t: (b, 0, t)),
        ),
        compiler_params=pltpu.CompilerParams(
            dimension_semantics=("parallel", "parallel"),
            vmem_limit_bytes=vmem_limit,
        ),
    )(w_mod, b_col, x_flat)

    # (B, C_out, HW) -> NCHW: pure reshape, no transpose.
    return out_flat.reshape(B, C_out, H, W)


def _reference_forward(x, w_lat, affine_weight, affine_bias, weight, bias):
    """Pure-JAX transliteration of the PyTorch module for correctness checking."""
    B, C_in, H, W = x.shape
    w_dim = w_lat.shape[1]
    styles = w_lat @ (affine_weight * (1.0 / math.sqrt(w_dim))).T + affine_bias
    wmod = weight[None] * styles[:, None, :]
    dcoefs = jax.lax.rsqrt(jnp.sum(wmod * wmod, axis=2) + 1e-8)
    xf = jnp.transpose(x.reshape(B, C_in, H * W), (0, 2, 1)) * styles[:, None, :]
    y = xf @ weight.T
    y = y * dcoefs[:, None, :]
    y = jnp.transpose(y, (0, 2, 1)).reshape(B, -1, H, W)
    return y + bias[None, :, None, None]   # bias_act, act='linear', clamp=None


if __name__ == "__main__":
    # small shapes consistent with the module's forward
    B, C_in, C_out, H, W, w_dim = 2, 32, 3, 16, 16, 32

    key = jax.random.PRNGKey(0)
    kx, kw, kaw, kwt = jax.random.split(key, 4)

    # inputs
    x = jax.random.normal(kx, (B, C_in, H, W), jnp.float32)
    w_lat = jax.random.normal(kw, (B, w_dim), jnp.float32)

    # deterministic parameter init (shapes per ToRGBLayer.__init__)
    affine_weight = jax.random.normal(kaw, (C_in, w_dim), jnp.float32)      # randn([out, in])
    affine_bias = jnp.ones((C_in,), jnp.float32)                            # bias_init = 1
    bound = 1.0 / math.sqrt(C_in)
    weight = jax.random.uniform(kwt, (C_out, C_in), jnp.float32, -bound, bound)
    bias = jnp.zeros((C_out,), jnp.float32)

    out = to_rgb_layer(x, w_lat, affine_weight, affine_bias, weight, bias)
    out = jax.block_until_ready(out)

    ref = _reference_forward(x, w_lat, affine_weight, affine_bias, weight, bias)
    assert out.shape == (B, C_out, H, W)
    assert jnp.allclose(out, ref, rtol=1e-4, atol=1e-4), "Pallas output mismatch vs reference"

    print("KERNEL_OK")
</pallas_src>

<mosaic_0001>
module attributes {stable_mosaic.version = 11 : i64} {
  func.func @_to_rgb_kernel(%arg0: i32, %arg1: i32, %arg2: memref<1x3x32xf32, #tpu.memory_space<vmem>>, %arg3: memref<3x1xf32, #tpu.memory_space<vmem>>, %arg4: memref<1x32x256xf32, #tpu.memory_space<vmem>>, %arg5: memref<1x3x256xf32, #tpu.memory_space<vmem>>) attributes {dimension_semantics = [#tpu.dimension_semantics<parallel>, #tpu.dimension_semantics<parallel>], iteration_bounds = array<i64: 2, 1>, scalar_prefetch = 0 : i64, scratch_operands = 0 : i64, tpu.core_type = #tpu.core_type<tc>, window_params = [{transform_indices = @transform_0, window_bounds = array<i64: 1, 3, 32>}, {pipeline_mode = #tpu.pipeline_mode<synchronous>, transform_indices = @transform_1, window_bounds = array<i64: 3, 1>}, {transform_indices = @transform_2, window_bounds = array<i64: 1, 32, 256>}, {transform_indices = @transform_3, window_bounds = array<i64: 1, 3, 256>}]} {
    %c0 = arith.constant 0 : index
    %c0_0 = arith.constant 0 : index
    %c0_1 = arith.constant 0 : index
    %0 = vector.load %arg2[%c0, %c0_0, %c0_1] : memref<1x3x32xf32, #tpu.memory_space<vmem>>, vector<1x3x32xf32>
    %1 = vector.shape_cast %0 : vector<1x3x32xf32> to vector<3x32xf32>
    %c0_2 = arith.constant 0 : index
    %c0_3 = arith.constant 0 : index
    %c0_4 = arith.constant 0 : index
    %2 = vector.load %arg4[%c0_2, %c0_3, %c0_4] : memref<1x32x256xf32, #tpu.memory_space<vmem>>, vector<1x32x256xf32>
    %3 = vector.shape_cast %2 : vector<1x32x256xf32> to vector<32x256xf32>
    %cst = arith.constant dense<0.000000e+00> : vector<3x256xf32>
    %4 = tpu.matmul %1, %3, %cst {dimension_numbers = #tpu.dot_dimension_numbers<[1], [0], [0], [1], [0, 0, 1, 1], [], []>} : vector<3x32xf32>, vector<32x256xf32>, vector<3x256xf32> -> vector<3x256xf32>
    %c0_5 = arith.constant 0 : index
    %c0_6 = arith.constant 0 : index
    %5 = vector.load %arg3[%c0_5, %c0_6] : memref<3x1xf32, #tpu.memory_space<vmem>>, vector<3x1xf32>
    %6 = vector.broadcast %5 : vector<3x1xf32> to vector<3x256xf32>
    %7 = arith.addf %4, %6 : vector<3x256xf32>
    %c0_7 = arith.constant 0 : index
    %c0_8 = arith.constant 0 : index
    %c0_9 = arith.constant 0 : index
    %8 = vector.load %arg5[%c0_7, %c0_8, %c0_9] : memref<1x3x256xf32, #tpu.memory_space<vmem>>, vector<1x3x256xf32>
    %9 = vector.shape_cast %8 : vector<1x3x256xf32> to vector<3x256xf32>
    %10 = vector.shape_cast %7 : vector<3x256xf32> to vector<1x3x256xf32>
    tpu.vector_store %arg5[%c0_7, %c0_8, %c0_9], %10 {strides = array<i32>} : memref<1x3x256xf32, #tpu.memory_space<vmem>>, vector<1x3x256xf32>,
    return
  }
  func.func @transform_0(%arg0: i32, %arg1: i32) -> (i32, i32, i32) {
    %c0_i32 = arith.constant 0 : i32
    %c0_i32_0 = arith.constant 0 : i32
    %c0_i32_1 = arith.constant 0 : i32
    return %arg0, %c0_i32, %c0_i32_0 : i32, i32, i32
  }
  func.func @transform_1(%arg0: i32, %arg1: i32) -> (i32, i32) {
    %c0_i32 = arith.constant 0 : i32
    %c0_i32_0 = arith.constant 0 : i32
    %c0_i32_1 = arith.constant 0 : i32
    return %c0_i32, %c0_i32_0 : i32, i32
  }
  func.func @transform_2(%arg0: i32, %arg1: i32) -> (i32, i32, i32) {
    %c0_i32 = arith.constant 0 : i32
    %c0_i32_0 = arith.constant 0 : i32
    return %arg0, %c0_i32, %arg1 : i32, i32, i32
  }
  func.func @transform_3(%arg0: i32, %arg1: i32) -> (i32, i32, i32) {
    %c0_i32 = arith.constant 0 : i32
    %c0_i32_0 = arith.constant 0 : i32
    return %arg0, %c0_i32, %arg1 : i32, i32, i32
  }
}

</mosaic_0001>

<llo_original>
// kernel: tpu_custom_call.1
$region0: #{tpu_custom_call.1}
  #allocation0 [shape = 'u32[]', space=smem, size = 0x4, offset = 0x4, fixed_abs, tag = 'smem constant byte address 0x4 - core index']
  #allocation1 [shape = 'u32[144,128]{1,0:T(1,128)}', space=vmem, size = 0x12000, scoped, tag = 'internal scratch']
  %s0 = inlined_call_operand.vmem [shape: f32[2,3,32], index: 0, kind: input, shape index: {}]
  %s1 = inlined_call_operand.vmem [shape: f32[3,1], index: 1, kind: input, shape index: {}]
  %s2 = inlined_call_operand.hbm [shape: f32[2,32,256], index: 2, kind: input, shape index: {}]
  %s3 = inlined_call_operand.vmem [shape: f32[2,3,256], index: 3, kind: output, shape index: {}]
  %s4 = sld [smem:[#allocation0]]
  $region49: #{tpu_custom_call.1} parent=0
    _
  %s6 = ssub.s32 1, %s4
  %s7 = scalar_select 0, %s6, %s4
  $region1: #{tpu_custom_call.1} parent=0
    #allocation2 [shape = 'u8[65536]{0}', space=vmem, size = 0x10000, scoped, tag = 'input window, operand 2']
    #allocation3 [shape = 's32[2]{0}', space=sflag, size = 0x8, scoped, tag = 'scoped memory for tpu_custom_call.1']
    %8 = vsyncpa [#allocation3], 0
    %s9 = scalar_lea.sflag [#allocation3], 1
    %10 = vsyncpa %s9, 0
    loop: start=0, step=1, limit=4
    $region2: #{tpu_custom_call.1} parent=1 // loop_pre_header
      _
    $region3: #{tpu_custom_call.1} parent=1 // loop_header
      %s12 = sphi 0, %s16
      %p13 = scmp.ge.s32.totalorder %s12, 4
      %s19 = sphi 0, %s31
      %s20 = sphi 0, %s27
      %s21 = sphi 0, %s19
      %s22 = sphi 0, %s20
      %s23 = sphi 0, %s21
      %s24 = sphi 0, %s22
      %s34 = sphi 0, %s36
      %s37 = sphi 0, %s34
      %s38 = sphi 0, %s37
      %s54 = sphi 0, %s38
      %s58 = sphi 0, %s58
      %s60 = sphi 0, %s58
      %s61 = sphi 0, %s60
      %s75 = sphi 0, %s61
      %s83 = sphi 0, %s85
      %s86 = sphi 0, %s83
      %s87 = sphi 0, %s86
      %s103 = sphi 0, %s87
      %s111 = sphi 0, %s113
      %s114 = sphi 0, %s111
      %s115 = sphi 0, %s114
      %s131 = sphi 0, %s115
    $region4: #{tpu_custom_call.1} parent=1 // loop_header_branch
      %15 = sbr.rel (%p13) target = $region8
    $region5: #{tpu_custom_call.1} parent=1 // loop_body
      %s17 = ssub.s32 %s12, 1
      %s18 = ssub.s32 %s12, 2
      %s25 = sadd.s32 1, %s20
      %p26 = scmp.ge.s32.totalorder %s25, 1
      %s27 = scalar_select %p26, 0, %s25
      %s28 = sadd.s32 1, %s19
      %s29 = scalar_select %p26, %s28, %s19
      %p30 = scmp.ge.s32.totalorder %s29, 2
      %s31 = scalar_select %p30, 0, %s29
      %s32 = ssub.s32 %s19, %s31
      %p33 = scmp.eq.s32.totalorder %s32, 0
      %s35 = sadd.s32 %s34, 1
      %s36 = scalar_select %p33, %s34, %s35
      %p39 = pneg %p33
      %p40 = scmp.eq.s32.totalorder %s12, 1
      %p41 = por %p39, %p40
      %p42 = scmp.ne.s32.totalorder %s34, %s37
      %p43 = scmp.eq.s32.totalorder %s12, 0
      %p44 = por %p42, %p43
      %p45 = scmp.ne.s32.totalorder %s34, %s37
      %p46 = scmp.eq.s32.totalorder %s17, 1
      %p47 = por %p45, %p46
      %p48 = scmp.ne.s32.totalorder %s37, %s38
      %p49 = scmp.eq.s32.totalorder %s17, 0
      %p50 = por %p48, %p49
      %p51 = scmp.ne.s32.totalorder %s37, %s38
      %p52 = scmp.eq.s32.totalorder %s18, 1
      %p53 = por %p51, %p52
      %p55 = scmp.ne.s32.totalorder %s38, %s54
      %p56 = scmp.eq.s32.totalorder %s18, 0
      %p57 = por %p55, %p56
      %s59 = sadd.s32 %s58, 1
      %p62 = scmp.eq.s32.totalorder %s12, 1
      %p63 = scmp.ne.s32.totalorder %s58, %s60
      %p64 = scmp.eq.s32.totalorder %s12, 0
      %p65 = por %p63, %p64
      %p66 = scmp.ne.s32.totalorder %s58, %s60
      %p67 = scmp.eq.s32.totalorder %s17, 1
      %p68 = por %p66, %p67
      %p69 = scmp.ne.s32.totalorder %s60, %s61
      %p70 = scmp.eq.s32.totalorder %s17, 0
      %p71 = por %p69, %p70
      %p72 = scmp.ne.s32.totalorder %s60, %s61
      %p73 = scmp.eq.s32.totalorder %s18, 1
      %p74 = por %p72, %p73
      %p76 = scmp.ne.s32.totalorder %s61, %s75
      %p77 = scmp.eq.s32.totalorder %s18, 0
      %p78 = por %p76, %p77
      %s79 = ssub.s32 %s19, %s31
      %s80 = ssub.s32 %s20, %s27
      %s81 = sor.u32 %s79, %s80
      %p82 = scmp.eq.s32.totalorder %s81, 0
      %s84 = sadd.s32 %s83, 1
      %s85 = scalar_select %p82, %s83, %s84
      %p88 = pneg %p82
      %p89 = scmp.eq.s32.totalorder %s12, 1
      %p90 = por %p88, %p89
      %p91 = scmp.ne.s32.totalorder %s83, %s86
      %p92 = scmp.eq.s32.totalorder %s12, 0
      %p93 = por %p91, %p92
      %p94 = scmp.ne.s32.totalorder %s83, %s86
      %p95 = scmp.eq.s32.totalorder %s17, 1
      %p96 = por %p94, %p95
      %p97 = scmp.ne.s32.totalorder %s86, %s87
      %p98 = scmp.eq.s32.totalorder %s17, 0
      %p99 = por %p97, %p98
      %p100 = scmp.ne.s32.totalorder %s86, %s87
      %p101 = scmp.eq.s32.totalorder %s18, 1
      %p102 = por %p100, %p101
      %p104 = scmp.ne.s32.totalorder %s87, %s103
      %p105 = scmp.eq.s32.totalorder %s18, 0
      %p106 = por %p104, %p105
      %s107 = ssub.s32 %s19, %s31
      %s108 = ssub.s32 %s20, %s27
      %s109 = sor.u32 %s107, %s108
      %p110 = scmp.eq.s32.totalorder %s109, 0
      %s112 = sadd.s32 %s111, 1
      %s113 = scalar_select %p110, %s111, %s112
      %p116 = pneg %p110
      %p117 = scmp.eq.s32.totalorder %s12, 1
      %p118 = por %p116, %p117
      %p119 = scmp.ne.s32.totalorder %s111, %s114
      %p120 = scmp.eq.s32.totalorder %s12, 0
      %p121 = por %p119, %p120
      %p122 = scmp.ne.s32.totalorder %s111, %s114
      %p123 = scmp.eq.s32.totalorder %s17, 1
      %p124 = por %p122, %p123
      %p125 = scmp.ne.s32.totalorder %s114, %s115
      %p126 = scmp.eq.s32.totalorder %s17, 0
      %p127 = por %p125, %p126
      %p128 = scmp.ne.s32.totalorder %s114, %s115
      %p129 = scmp.eq.s32.totalorder %s18, 1
      %p130 = por %p128, %p129
      %p132 = scmp.ne.s32.totalorder %s115, %s131
      %p133 = scmp.eq.s32.totalorder %s18, 0
      %p134 = por %p132, %p133
      %p135 = scmp.le.s32.totalorder 1, %s12
      %p136 = scmp.lt.s32.totalorder %s12, 3
      %p137 = pnand %p135, %p136
      %p138 = pneg %p137
      // Predicated region
      $region9: #{tpu_custom_call.1} parent=5 // pred_check
        _
      $region10: #{tpu_custom_call.1} parent=5 // pred_check_branch
        %140 = sbr.rel (%p137) target = $region12
      $region11: #{tpu_custom_call.1} parent=5 // pred_region
        %s141 = ssub.s32 %s12, 1
        // Predicated region
        $region13: #{tpu_custom_call.1} parent=11 // pred_check
          %p142 = pneg %p71
        $region14: #{tpu_custom_call.1} parent=11 // pred_check_branch
          %144 = sbr.rel (%p142) target = $region16
        $region15: #{tpu_custom_call.1} parent=11 // pred_region
          _
        $region16: #{tpu_custom_call.1} parent=11 // pred_fallthru
          _
      $region12: #{tpu_custom_call.1} parent=5 // pred_fallthru
        _
      %p145 = scmp.lt.s32.totalorder %s12, 2
      // Predicated region
      $region17: #{tpu_custom_call.1} parent=5 // pred_check
        %p146 = pneg %p145
      $region18: #{tpu_custom_call.1} parent=5 // pred_check_branch
        %148 = sbr.rel (%p146) target = $region20
      $region19: #{tpu_custom_call.1} parent=5 // pred_region
        // Predicated region
        $region21: #{tpu_custom_call.1} parent=19 // pred_check
          %p149 = pneg %p44
        $region22: #{tpu_custom_call.1} parent=19 // pred_check_branch
          %151 = sbr.rel (%p149) target = $region24
        $region23: #{tpu_custom_call.1} parent=19 // pred_region
          %p152 = scmp.lt.s32.totalorder %s19, 1
          %s153 = scalar_select %p152, %s19, 1
          %s154 = smul.addr %s153, 4
          %s155 = scalar_lea.vmem %s0, %s154
        $region24: #{tpu_custom_call.1} parent=19 // pred_fallthru
          _
        // Predicated region
        $region25: #{tpu_custom_call.1} parent=19 // pred_check
          %p156 = pneg %p93
        $region26: #{tpu_custom_call.1} parent=19 // pred_check_branch
          %158 = sbr.rel (%p156) target = $region28
        $region27: #{tpu_custom_call.1} parent=19 // pred_region
          %s159 = sand.u32 %s83, 1
          %s160 = scalar_lea.sflag [#allocation3], %s159
          %s161 = sand.u32 %s83, 1
          %s162 = smul.addr %s161, 64
          %s163 = scalar_lea.vmem [#allocation2], %s162
          %s164 = smul.u32 2, %s20
          %s166 = ssub.s32 1024, 1024
          %167 = vsyncadd %s160, %s166
          %s168 = smul.addr %s19, 8
          %s169 = sadd.s32 %s164, %s168
          %s170 = smul.addr %s169, 128
          %s171 = scalar_lea.hbm %s2, %s170
          %s172 = sshll.u32 %s163, 4
          %s173 = int_to_ptr.vmem [resolvable:$true] %s172
          %178 = dma.hbm_to_vmem [thread:$0]  %s171, 1024, %s173, %s160, 256, 256, 16
        $region28: #{tpu_custom_call.1} parent=19 // pred_fallthru
          _
      $region20: #{tpu_custom_call.1} parent=5 // pred_fallthru
        _
      %p179 = scmp.le.s32.totalorder 1, %s12
      %p180 = scmp.lt.s32.totalorder %s12, 3
      %p181 = pnand %p179, %p180
      %p182 = pneg %p181
      // Predicated region
      $region29: #{tpu_custom_call.1} parent=5 // pred_check
        _
      $region30: #{tpu_custom_call.1} parent=5 // pred_check_branch
        %184 = sbr.rel (%p181) target = $region32
      $region31: #{tpu_custom_call.1} parent=5 // pred_region
        %s185 = ssub.s32 %s12, 1
        %s186 = sand.u32 %s86, 1
        %s187 = scalar_lea.sflag [#allocation3], %s186
        %s188 = sand.u32 %s86, 1
        %s189 = smul.addr %s188, 64
        %s190 = scalar_lea.vmem [#allocation2], %s189
        // Predicated region
        $region33: #{tpu_custom_call.1} parent=31 // pred_check
          %p191 = pneg %p99
        $region34: #{tpu_custom_call.1} parent=31 // pred_check_branch
          %193 = sbr.rel (%p191) target = $region36
        $region35: #{tpu_custom_call.1} parent=31 // pred_region
          %194 = dma.done %s187, 1024
        $region36: #{tpu_custom_call.1} parent=31 // pred_fallthru
          _
        %p195 = scmp.lt.s32.totalorder %s21, 1
        %s196 = scalar_select %p195, %s21, 1
        %s197 = smul.addr %s196, 4
        %s198 = scalar_lea.vmem %s0, %s197
        %p199 = pneg %p50
        %p200 = pneg %p47
        %p201 = pneg %p71
        %p202 = pneg %p68
        %s203 = sand.u32 %s86, 1
        %s204 = scalar_lea.sflag [#allocation3], %s203
        %s205 = sand.u32 %s86, 1
        %s206 = smul.addr %s205, 64
        %s207 = scalar_lea.vmem [#allocation2], %s206
        %p208 = pneg %p99
        %p209 = pneg %p96
        %p210 = pneg %p127
        %p211 = pneg %p124
        %s212 = smul.u32 2, %s22
        %p213 = scmp.lt.s32.totalorder %s21, 1
        %s214 = scalar_select %p213, %s21, 1
        %p215 = scmp.lt.s32.totalorder %s212, 1
        %s216 = scalar_select %p215, %s212, 1
        %s217 = smul.addr %s214, 2
        %s218 = sadd.s32 %s216, %s217
        %s219 = smul.addr %s218, 4
        %s220 = scalar_lea.vmem %s3, %s219
        %p221 = scmp.lt.s32.totalorder %s21, 1
        %s222 = scalar_select %p221, %s21, 1
        %s223 = smul.addr %s222, 4
        %s224 = scalar_lea.vmem %s0, %s223
        %s225 = smul.u32 2, %s22
        %s226 = smul.u32 2, %s22
        %p227 = scmp.lt.s32.totalorder %s21, 1
        %s228 = scalar_select %p227, %s21, 1
        %p229 = scmp.lt.s32.totalorder %s226, 1
        %s230 = scalar_select %p229, %s226, 1
        %s231 = smul.addr %s228, 2
        %s232 = sadd.s32 %s230, %s231
        %s233 = smul.addr %s232, 4
        %s234 = scalar_lea.vmem %s3, %s233
        %s235 = smul.u32 2, %s22
        %v236 = vld [vmem:[%s224] sm:$0x7]
        %v237 = vld [vmem:[%s190] sm:$0xff]
        %v238 = vld [vmem:[%s190 + $0x8] sm:$0xff]
        %v239 = vld [vmem:[%s190 + $0x10] sm:$0xff]
        %v240 = vld [vmem:[%s190 + $0x18] sm:$0xff]
        %v241 = vld [vmem:[%s190 + $0x20] sm:$0xff]
        %v242 = vld [vmem:[%s190 + $0x28] sm:$0xff]
        %v243 = vld [vmem:[%s190 + $0x30] sm:$0xff]
        %v244 = vld [vmem:[%s190 + $0x38] sm:$0xff]
        %v245 = vld [vmem:[%s1] sm:$0x7]
        %247 = vset.pattern.permute.xlu0 0
        %248 = vperm.xlu0 %247, %v245
        %v249 = vpop.permute.xlu0 %248
        %vm251 = vcmask 261120
        %v253 = vsel %vm251, %v236, 0
        %255 = vmatprep.subr.mxu0 %v238
        %256 = vmatpush1.msra.mxu0 %v237
        %257 = vmatprep.subr.mxu0 %v240
        %258 = vmatpush1.msra.mxu0 %v239
        %259 = vmatprep.subr.mxu0 %v242
        %260 = vmatpush1.msra.mxu0 %v241
        %261 = vmatprep.subr.mxu0 %v244
        %262 = vmatpush1.msra.mxu0 %v243
        %263 = vmatprep.subr.mxu0 0.0
        %264 = vmatpush1.msra.mxu0 0.0
        %265 = vmatprep.subr.mxu0 0.0
        %266 = vmatpush1.msra.mxu0 0.0
        %267 = vmatprep.subr.mxu0 0.0
        %268 = vmatpush1.msra.mxu0 0.0
        %269 = vmatprep.subr.mxu0 0.0
        %270 = vmatpush1.msra.mxu0 0.0
        %271 = vmatprep.subr.mxu0 0.0
        %272 = vmatpush1.msra.mxu0 0.0
        %273 = vmatprep.subr.mxu0 0.0
        %274 = vmatpush1.msra.mxu0 0.0
        %275 = vmatprep.subr.mxu0 0.0
        %276 = vmatpush1.msra.mxu0 0.0
        %277 = vmatprep.subr.mxu0 0.0
        %278 = vmatpush1.msra.mxu0 0.0
        %279 = vmatprep.subr.mxu0 0.0
        %280 = vmatpush1.msra.mxu0 0.0
        %281 = vmatprep.subr.mxu0 0.0
        %282 = vmatpush1.msra.mxu0 0.0
        %283 = vmatprep.subr.mxu0 0.0
        %284 = vmatpush1.msra.mxu0 0.0
        %285 = vmatprep.subr.mxu0 0.0
        %286 = vmatpush1.msra.mxu0 0.0
        %287 = vmatprep.subr.mxu0 0.0
        %288 = vmatpush1.msra.mxu0 0.0
        %289 = vmatprep.subr.mxu0 0.0
        %290 = vmatpush1.msra.mxu0 0.0
        %291 = vmatprep.subr.mxu0 0.0
        %292 = vmatpush1.msra.mxu0 0.0
        %293 = vmatprep.subr.mxu0 0.0
        %294 = vmatpush1.msra.mxu0 0.0
        %295 = vmatprep.subr.mxu0 0.0
        %296 = vmatpush1.msra.mxu0 0.0
        %297 = vmatprep.subr.mxu0 0.0
        %298 = vmatpush1.msra.mxu0 0.0
        %299 = vmatprep.subr.mxu0 0.0
        %300 = vmatpush1.msra.mxu0 0.0
        %301 = vmatprep.subr.mxu0 0.0
        %302 = vmatpush1.msra.mxu0 0.0
        %303 = vmatprep.subr.mxu0 0.0
        %304 = vmatpush1.msra.mxu0 0.0
        %305 = vmatprep.subr.mxu0 0.0
        %306 = vmatpush1.msra.mxu0 0.0
        %307 = vmatprep.subr.mxu0 0.0
        %308 = vmatpush1.msra.mxu0 0.0
        %309 = vmatprep.subr.mxu0 0.0
        %310 = vmatpush1.msra.mxu0 0.0
        %311 = vmatprep.subr.mxu0 0.0
        %312 = vmatpush1.msra.mxu0 0.0
        %313 = vmatprep.subr.mxu0 0.0
        %314 = vmatpush1.msra.mxu0 0.0
        %315 = vmatprep.subr.mxu0 0.0
        %316 = vmatpush1.msra.mxu0 0.0
        %317 = vmatprep.subr.mxu0 0.0
        %318 = vmatpush1.msra.mxu0 0.0
        %319 = vmatprep.mubr.f32.mxu0 0.0
        %320 = vmatmul.mubr.f32.gmra.mrb[0].mxu0 %v253
        %v321 = vpop.f32.mrb[0].mxu0
        %v322 = vadd.f32 %v249, %v321
        %v323 = vpop.f32.mrb[0].mxu0
        %v324 = vadd.f32 %v249, %v323
        %325 = vdwg.mxu0
        %v328 = vcombine.low %v322, %v324
        %330 = vst [vmem:[%s234] sm:$0x77] %v328
        %s331 = smul.u32 2, %s22
        %p332 = scmp.lt.s32.totalorder %s21, 1
        %s333 = scalar_select %p332, %s21, 1
        %p334 = scmp.lt.s32.totalorder %s331, 1
        %s335 = scalar_select %p334, %s331, 1
        %s336 = smul.addr %s333, 2
        %s337 = sadd.s32 %s335, %s336
        %s338 = smul.addr %s337, 4
        %s339 = scalar_lea.vmem %s3, %s338
        // Predicated region
        $region37: #{tpu_custom_call.1} parent=31 // pred_check
          %p340 = pneg %p124
        $region38: #{tpu_custom_call.1} parent=31 // pred_check_branch
          %342 = sbr.rel (%p340) target = $region40
        $region39: #{tpu_custom_call.1} parent=31 // pred_region
          %s343 = smul.u32 2, %s22
        $region40: #{tpu_custom_call.1} parent=31 // pred_fallthru
          _
      $region32: #{tpu_custom_call.1} parent=5 // pred_fallthru
        _
      %p344 = scmp.le.s32.totalorder 2, %s12
      // Predicated region
      $region41: #{tpu_custom_call.1} parent=5 // pred_check
        %p345 = pneg %p344
      $region42: #{tpu_custom_call.1} parent=5 // pred_check_branch
        %347 = sbr.rel (%p345) target = $region44
      $region43: #{tpu_custom_call.1} parent=5 // pred_region
        %s348 = ssub.s32 %s12, 2
        // Predicated region
        $region45: #{tpu_custom_call.1} parent=43 // pred_check
          %p349 = pneg %p130
        $region46: #{tpu_custom_call.1} parent=43 // pred_check_branch
          %351 = sbr.rel (%p349) target = $region48
        $region47: #{tpu_custom_call.1} parent=43 // pred_region
          %s352 = smul.u32 2, %s24
          %p353 = scmp.lt.s32.totalorder %s23, 1
          %s354 = scalar_select %p353, %s23, 1
          %p355 = scmp.lt.s32.totalorder %s352, 1
          %s356 = scalar_select %p355, %s352, 1
          %s357 = smul.addr %s354, 2
          %s358 = sadd.s32 %s356, %s357
          %s359 = smul.addr %s358, 4
          %s360 = scalar_lea.vmem %s3, %s359
        $region48: #{tpu_custom_call.1} parent=43 // pred_fallthru
          _
      $region44: #{tpu_custom_call.1} parent=5 // pred_fallthru
        _
    $region6: #{tpu_custom_call.1} parent=1 // loop_footer
      %s16 = sadd.s32 1, %s12
    $region7: #{tpu_custom_call.1} parent=1 // loop_footer_branch
      %11 = sbr.rel target = $region3
    $region8: #{tpu_custom_call.1} parent=1 // loop_exit
      _
    %361 = vsyncpa [#allocation3], 1
    %s362 = scalar_lea.sflag [#allocation3], 1
    %363 = vsyncpa %s362, 1

</llo_original>
